<compile_context>
chip_gen: v5e
topology: v5e:2x2
jax: 0.10.0
libtpu: 0.0.40
codegen_flags: <defaults>
</compile_context>

<pallas_src>
import jax
import jax.numpy as jnp
from jax.experimental import pallas as pl
from jax.experimental.pallas import tpu as pltpu


# --------------------------- conv + BN + ReLU path ------------------------- #

def _conv_bn_relu_kernel(x_ref, w_ref, scale_ref, bias_ref, o_ref):
    # x_ref:  (1, Cin, TM)   w_ref: (Cout, Cin)
    # scale/bias: (Cout, 1)  o_ref: (1, Cout, TM)
    y = jnp.dot(w_ref[...], x_ref[0], preferred_element_type=jnp.float32)
    y = y * scale_ref[...] + bias_ref[...]                 # eval-mode BatchNorm
    o_ref[0] = jnp.maximum(y, 0.0).astype(o_ref.dtype)     # ReLU


# Lane-tile target (multiple of 128).  f32 footprint per step is roughly
# 2 buffers * (Cin + Cout) * TM * 4 bytes -- tiny for these channel counts,
# well under the scoped VMEM default on v5e/v6e/v7x, while amortizing the
# ~0.35 us per-grid-step overhead.
_TM_TARGET = 2048


def conv_bn_relu_1x1(x, weight, bn_gamma, bn_beta, bn_mean, bn_var, stride,
                     eps=1e-5):
    """1x1 conv (no bias, stride) + BN(eval) + ReLU.  x is NCHW."""
    n, cin, h, w = x.shape
    cout = weight.shape[0]

    # Stride of a 1x1 / pad-0 conv is pure spatial subsampling.
    # TODO(synk): could fold this strided read into the kernel DMA (strided
    # pl.ds / index math) to save one XLA copy; modest win at these sizes.
    xs = x[:, :, ::stride, ::stride] if stride != 1 else x
    ho, wo = xs.shape[2], xs.shape[3]
    m = ho * wo
    xm = xs.reshape(n, cin, m)               # NCHW-contiguous, no transpose

    wm = weight.reshape(cout, cin).astype(jnp.float32)

    # Fold BN into a per-output-channel affine scale/shift.
    scale = (bn_gamma / jnp.sqrt(bn_var + eps)).astype(jnp.float32)
    bias = (bn_beta - bn_mean * scale).astype(jnp.float32)
    scale = scale.reshape(cout, 1)
    bias = bias.reshape(cout, 1)

    # Lane tile: full extent when small (block == full dim is always legal),
    # otherwise a multiple-of-128 tile with a pipelined grid over M.
    tm = m if m <= _TM_TARGET else _TM_TARGET
    grid = (n, pl.cdiv(m, tm))

    out = pl.pallas_call(
        _conv_bn_relu_kernel,
        out_shape=jax.ShapeDtypeStruct((n, cout, m), x.dtype),
        grid_spec=pltpu.PrefetchScalarGridSpec(
            num_scalar_prefetch=0,
            grid=grid,
            in_specs=[
                pl.BlockSpec((1, cin, tm), lambda b, j: (b, 0, j)),
                pl.BlockSpec((cout, cin), lambda b, j: (0, 0)),   # replicated
                pl.BlockSpec((cout, 1), lambda b, j: (0, 0)),     # replicated
                pl.BlockSpec((cout, 1), lambda b, j: (0, 0)),     # replicated
            ],
            out_specs=pl.BlockSpec((1, cout, tm), lambda b, j: (b, 0, j)),
        ),
        compiler_params=pltpu.CompilerParams(
            dimension_semantics=("parallel", "parallel")),
    )(xm, wm, scale, bias)

    # Output is already NCHW: this reshape is free (contiguous).
    return out.reshape(n, cout, ho, wo)


# ------------------------------ module wrapper ----------------------------- #

class IdentityPallas:
    """JAX/Pallas port of CDARTS hit_ops.Identity (forward / eval mode)."""

    def __init__(self, input_size, in_channels, out_channels, stride, key):
        self.in_channels = in_channels
        self.out_channels = out_channels
        self.stride = stride
        self.is_passthrough = (in_channels == out_channels and stride == 1)
        if not self.is_passthrough:
            # TODO(synk): the original PyTorch branch raises (bad `padding=`
            # kwarg / bn_type='bn' missing from norm_cfg_); we implement the
            # intended ConvBNReLU(1x1, stride, bias=False) + BN(eval) + ReLU.
            fan_out = out_channels * 1 * 1
            std = (2.0 / fan_out) ** 0.5   # kaiming_normal_(fan_out, relu)
            self.weight = std * jax.random.normal(
                key, (out_channels, in_channels, 1, 1), dtype=jnp.float32)
            self.bn_gamma = jnp.ones((out_channels,), jnp.float32)
            self.bn_beta = jnp.zeros((out_channels,), jnp.float32)
            self.bn_mean = jnp.zeros((out_channels,), jnp.float32)
            self.bn_var = jnp.ones((out_channels,), jnp.float32)

    def __call__(self, x):
        if self.is_passthrough:
            # True no-op (nn.Sequential()): no kernel, no HBM round-trip.
            return x
        return conv_bn_relu_1x1(x, self.weight, self.bn_gamma, self.bn_beta,
                                self.bn_mean, self.bn_var, self.stride)


# ---------------------------------- main ----------------------------------- #

if __name__ == "__main__":
    key = jax.random.PRNGKey(0)
    kx, kw = jax.random.split(key)

    # NCHW input, small shapes.
    x = jax.random.normal(kx, (2, 4, 16, 16), dtype=jnp.float32)

    # Path 1: in == out, stride == 1  -> true identity (no-op).
    mod_id = IdentityPallas(input_size=16, in_channels=4, out_channels=4,
                            stride=1, key=kw)
    y_id = jax.block_until_ready(mod_id(x))
    assert y_id.shape == x.shape
    assert jnp.allclose(y_id, x), "identity passthrough mismatch"

    # Path 2: channel change + stride -> 1x1 conv + BN(eval) + ReLU (Pallas).
    mod_cv = IdentityPallas(input_size=16, in_channels=4, out_channels=8,
                            stride=2, key=kw)
    y_cv = jax.block_until_ready(mod_cv(x))
    assert y_cv.shape == (2, 8, 8, 8)

    xs = x[:, :, ::2, ::2]
    ref = jnp.einsum('nchw,oc->nohw', xs, mod_cv.weight.reshape(8, 4))
    ref = jnp.maximum(ref / jnp.sqrt(1.0 + 1e-5), 0.0)
    assert jnp.allclose(y_cv, ref, atol=1e-5, rtol=1e-5), "conv path mismatch"

    # Path 3: larger spatial extent to exercise the tiled M grid (M = 4096,
    # TM = 2048 -> grid = (1, 2)).
    x3 = jax.random.normal(kx, (1, 4, 64, 64), dtype=jnp.float32)
    mod3 = IdentityPallas(input_size=64, in_channels=4, out_channels=8,
                          stride=1, key=kw)
    y3 = jax.block_until_ready(mod3(x3))
    assert y3.shape == (1, 8, 64, 64)
    ref3 = jnp.einsum('nchw,oc->nohw', x3, mod3.weight.reshape(8, 4))
    ref3 = jnp.maximum(ref3 / jnp.sqrt(1.0 + 1e-5), 0.0)
    assert jnp.allclose(y3, ref3, atol=1e-5, rtol=1e-5), "tiled conv mismatch"

    print("KERNEL_OK")
</pallas_src>

<mosaic_0001>
module attributes {stable_mosaic.version = 11 : i64} {
  func.func @_conv_bn_relu_kernel(%arg0: i32, %arg1: i32, %arg2: memref<1x4x64xf32, #tpu.memory_space<vmem>>, %arg3: memref<8x4xf32, #tpu.memory_space<vmem>>, %arg4: memref<8x1xf32, #tpu.memory_space<vmem>>, %arg5: memref<8x1xf32, #tpu.memory_space<vmem>>, %arg6: memref<1x8x64xf32, #tpu.memory_space<vmem>>) attributes {dimension_semantics = [#tpu.dimension_semantics<parallel>, #tpu.dimension_semantics<parallel>], iteration_bounds = array<i64: 2, 1>, scalar_prefetch = 0 : i64, scratch_operands = 0 : i64, tpu.core_type = #tpu.core_type<tc>, window_params = [{transform_indices = @transform_0, window_bounds = array<i64: 1, 4, 64>}, {pipeline_mode = #tpu.pipeline_mode<synchronous>, transform_indices = @transform_1, window_bounds = array<i64: 8, 4>}, {pipeline_mode = #tpu.pipeline_mode<synchronous>, transform_indices = @transform_2, window_bounds = array<i64: 8, 1>}, {pipeline_mode = #tpu.pipeline_mode<synchronous>, transform_indices = @transform_3, window_bounds = array<i64: 8, 1>}, {transform_indices = @transform_4, window_bounds = array<i64: 1, 8, 64>}]} {
    %c0 = arith.constant 0 : index
    %c0_0 = arith.constant 0 : index
    %0 = vector.load %arg3[%c0, %c0_0] : memref<8x4xf32, #tpu.memory_space<vmem>>, vector<8x4xf32>
    %c0_1 = arith.constant 0 : index
    %c0_2 = arith.constant 0 : index
    %c0_3 = arith.constant 0 : index
    %1 = vector.load %arg2[%c0_1, %c0_2, %c0_3] : memref<1x4x64xf32, #tpu.memory_space<vmem>>, vector<1x4x64xf32>
    %2 = vector.shape_cast %1 : vector<1x4x64xf32> to vector<4x64xf32>
    %cst = arith.constant dense<0.000000e+00> : vector<8x64xf32>
    %3 = tpu.matmul %0, %2, %cst {dimension_numbers = #tpu.dot_dimension_numbers<[1], [0], [0], [1], [0, 0, 1, 1], [], []>} : vector<8x4xf32>, vector<4x64xf32>, vector<8x64xf32> -> vector<8x64xf32>
    %c0_4 = arith.constant 0 : index
    %c0_5 = arith.constant 0 : index
    %4 = vector.load %arg4[%c0_4, %c0_5] : memref<8x1xf32, #tpu.memory_space<vmem>>, vector<8x1xf32>
    %5 = vector.broadcast %4 : vector<8x1xf32> to vector<8x64xf32>
    %6 = arith.mulf %3, %5 : vector<8x64xf32>
    %c0_6 = arith.constant 0 : index
    %c0_7 = arith.constant 0 : index
    %7 = vector.load %arg5[%c0_6, %c0_7] : memref<8x1xf32, #tpu.memory_space<vmem>>, vector<8x1xf32>
    %8 = vector.broadcast %7 : vector<8x1xf32> to vector<8x64xf32>
    %9 = arith.addf %6, %8 : vector<8x64xf32>
    %cst_8 = arith.constant 0.000000e+00 : f32
    %10 = vector.broadcast %cst_8 : f32 to vector<8x64xf32>
    %11 = arith.maximumf %9, %10 : vector<8x64xf32>
    %c0_9 = arith.constant 0 : index
    %c0_10 = arith.constant 0 : index
    %c0_11 = arith.constant 0 : index
    %12 = vector.load %arg6[%c0_9, %c0_10, %c0_11] : memref<1x8x64xf32, #tpu.memory_space<vmem>>, vector<1x8x64xf32>
    %13 = vector.shape_cast %12 : vector<1x8x64xf32> to vector<8x64xf32>
    %14 = vector.shape_cast %11 : vector<8x64xf32> to vector<1x8x64xf32>
    tpu.vector_store %arg6[%c0_9, %c0_10, %c0_11], %14 {strides = array<i32>} : memref<1x8x64xf32, #tpu.memory_space<vmem>>, vector<1x8x64xf32>,
    return
  }
  func.func @transform_0(%arg0: i32, %arg1: i32) -> (i32, i32, i32) {
    %c0_i32 = arith.constant 0 : i32
    %c0_i32_0 = arith.constant 0 : i32
    return %arg0, %c0_i32, %arg1 : i32, i32, i32
  }
  func.func @transform_1(%arg0: i32, %arg1: i32) -> (i32, i32) {
    %c0_i32 = arith.constant 0 : i32
    %c0_i32_0 = arith.constant 0 : i32
    %c0_i32_1 = arith.constant 0 : i32
    return %c0_i32, %c0_i32_0 : i32, i32
  }
  func.func @transform_2(%arg0: i32, %arg1: i32) -> (i32, i32) {
    %c0_i32 = arith.constant 0 : i32
    %c0_i32_0 = arith.constant 0 : i32
    %c0_i32_1 = arith.constant 0 : i32
    return %c0_i32, %c0_i32_0 : i32, i32
  }
  func.func @transform_3(%arg0: i32, %arg1: i32) -> (i32, i32) {
    %c0_i32 = arith.constant 0 : i32
    %c0_i32_0 = arith.constant 0 : i32
    %c0_i32_1 = arith.constant 0 : i32
    return %c0_i32, %c0_i32_0 : i32, i32
  }
  func.func @transform_4(%arg0: i32, %arg1: i32) -> (i32, i32, i32) {
    %c0_i32 = arith.constant 0 : i32
    %c0_i32_0 = arith.constant 0 : i32
    return %arg0, %c0_i32, %arg1 : i32, i32, i32
  }
}

</mosaic_0001>

<llo_original>
// kernel: tpu_custom_call.1
$region0: #{tpu_custom_call.1}
  #allocation0 [shape = 'u32[]', space=smem, size = 0x4, offset = 0x4, fixed_abs, tag = 'smem constant byte address 0x4 - core index']
  #allocation1 [shape = 'u32[72,128]{1,0:T(1,128)}', space=vmem, size = 0x9000, scoped, tag = 'internal scratch']
  %s0 = inlined_call_operand.vmem [shape: f32[2,4,64], index: 0, kind: input, shape index: {}]
  %s1 = inlined_call_operand.vmem [shape: f32[8,4], index: 1, kind: input, shape index: {}]
  %s2 = inlined_call_operand.vmem [shape: f32[8,1], index: 2, kind: input, shape index: {}]
  %s3 = inlined_call_operand.vmem [shape: f32[8,1], index: 3, kind: input, shape index: {}]
  %s4 = inlined_call_operand.hbm [shape: f32[2,8,64], index: 4, kind: output, shape index: {}]
  %s5 = sld [smem:[#allocation0]]
  $region49: #{tpu_custom_call.1} parent=0
    _
  %s7 = ssub.s32 1, %s5
  %s8 = scalar_select 0, %s7, %s5
  $region1: #{tpu_custom_call.1} parent=0
    #allocation2 [shape = 'u8[8192]{0}', space=vmem, size = 0x2000, scoped, tag = 'output window, operand 0']
    #allocation3 [shape = 's32[2]{0}', space=sflag, size = 0x8, scoped, tag = 'scoped memory for tpu_custom_call.1']
    %9 = vsyncpa [#allocation3], 0
    %s10 = scalar_lea.sflag [#allocation3], 1
    %11 = vsyncpa %s10, 0
    loop: start=0, step=1, limit=4
    $region2: #{tpu_custom_call.1} parent=1 // loop_pre_header
      _
    $region3: #{tpu_custom_call.1} parent=1 // loop_header
      %s13 = sphi 0, %s17
      %p14 = scmp.ge.s32.totalorder %s13, 4
      %s20 = sphi 0, %s32
      %s21 = sphi 0, %s28
      %s22 = sphi 0, %s20
      %s23 = sphi 0, %s21
      %s24 = sphi 0, %s22
      %s25 = sphi 0, %s23
      %s37 = sphi 0, %s39
      %s40 = sphi 0, %s37
      %s41 = sphi 0, %s40
      %s57 = sphi 0, %s41
      %s61 = sphi 0, %s61
      %s63 = sphi 0, %s61
      %s64 = sphi 0, %s63
      %s78 = sphi 0, %s64
      %s82 = sphi 0, %s82
      %s84 = sphi 0, %s82
      %s85 = sphi 0, %s84
      %s99 = sphi 0, %s85
      %s103 = sphi 0, %s103
      %s105 = sphi 0, %s103
      %s106 = sphi 0, %s105
      %s120 = sphi 0, %s106
      %s128 = sphi 0, %s130
      %s131 = sphi 0, %s128
      %s132 = sphi 0, %s131
      %s148 = sphi 0, %s132
    $region4: #{tpu_custom_call.1} parent=1 // loop_header_branch
      %16 = sbr.rel (%p14) target = $region8
    $region5: #{tpu_custom_call.1} parent=1 // loop_body
      %s18 = ssub.s32 %s13, 1
      %s19 = ssub.s32 %s13, 2
      %s26 = sadd.s32 1, %s21
      %p27 = scmp.ge.s32.totalorder %s26, 1
      %s28 = scalar_select %p27, 0, %s26
      %s29 = sadd.s32 1, %s20
      %s30 = scalar_select %p27, %s29, %s20
      %p31 = scmp.ge.s32.totalorder %s30, 2
      %s32 = scalar_select %p31, 0, %s30
      %s33 = ssub.s32 %s20, %s32
      %s34 = ssub.s32 %s21, %s28
      %s35 = sor.u32 %s33, %s34
      %p36 = scmp.eq.s32.totalorder %s35, 0
      %s38 = sadd.s32 %s37, 1
      %s39 = scalar_select %p36, %s37, %s38
      %p42 = pneg %p36
      %p43 = scmp.eq.s32.totalorder %s13, 1
      %p44 = por %p42, %p43
      %p45 = scmp.ne.s32.totalorder %s37, %s40
      %p46 = scmp.eq.s32.totalorder %s13, 0
      %p47 = por %p45, %p46
      %p48 = scmp.ne.s32.totalorder %s37, %s40
      %p49 = scmp.eq.s32.totalorder %s18, 1
      %p50 = por %p48, %p49
      %p51 = scmp.ne.s32.totalorder %s40, %s41
      %p52 = scmp.eq.s32.totalorder %s18, 0
      %p53 = por %p51, %p52
      %p54 = scmp.ne.s32.totalorder %s40, %s41
      %p55 = scmp.eq.s32.totalorder %s19, 1
      %p56 = por %p54, %p55
      %p58 = scmp.ne.s32.totalorder %s41, %s57
      %p59 = scmp.eq.s32.totalorder %s19, 0
      %p60 = por %p58, %p59
      %s62 = sadd.s32 %s61, 1
      %p65 = scmp.eq.s32.totalorder %s13, 1
      %p66 = scmp.ne.s32.totalorder %s61, %s63
      %p67 = scmp.eq.s32.totalorder %s13, 0
      %p68 = por %p66, %p67
      %p69 = scmp.ne.s32.totalorder %s61, %s63
      %p70 = scmp.eq.s32.totalorder %s18, 1
      %p71 = por %p69, %p70
      %p72 = scmp.ne.s32.totalorder %s63, %s64
      %p73 = scmp.eq.s32.totalorder %s18, 0
      %p74 = por %p72, %p73
      %p75 = scmp.ne.s32.totalorder %s63, %s64
      %p76 = scmp.eq.s32.totalorder %s19, 1
      %p77 = por %p75, %p76
      %p79 = scmp.ne.s32.totalorder %s64, %s78
      %p80 = scmp.eq.s32.totalorder %s19, 0
      %p81 = por %p79, %p80
      %s83 = sadd.s32 %s82, 1
      %p86 = scmp.eq.s32.totalorder %s13, 1
      %p87 = scmp.ne.s32.totalorder %s82, %s84
      %p88 = scmp.eq.s32.totalorder %s13, 0
      %p89 = por %p87, %p88
      %p90 = scmp.ne.s32.totalorder %s82, %s84
      %p91 = scmp.eq.s32.totalorder %s18, 1
      %p92 = por %p90, %p91
      %p93 = scmp.ne.s32.totalorder %s84, %s85
      %p94 = scmp.eq.s32.totalorder %s18, 0
      %p95 = por %p93, %p94
      %p96 = scmp.ne.s32.totalorder %s84, %s85
      %p97 = scmp.eq.s32.totalorder %s19, 1
      %p98 = por %p96, %p97
      %p100 = scmp.ne.s32.totalorder %s85, %s99
      %p101 = scmp.eq.s32.totalorder %s19, 0
      %p102 = por %p100, %p101
      %s104 = sadd.s32 %s103, 1
      %p107 = scmp.eq.s32.totalorder %s13, 1
      %p108 = scmp.ne.s32.totalorder %s103, %s105
      %p109 = scmp.eq.s32.totalorder %s13, 0
      %p110 = por %p108, %p109
      %p111 = scmp.ne.s32.totalorder %s103, %s105
      %p112 = scmp.eq.s32.totalorder %s18, 1
      %p113 = por %p111, %p112
      %p114 = scmp.ne.s32.totalorder %s105, %s106
      %p115 = scmp.eq.s32.totalorder %s18, 0
      %p116 = por %p114, %p115
      %p117 = scmp.ne.s32.totalorder %s105, %s106
      %p118 = scmp.eq.s32.totalorder %s19, 1
      %p119 = por %p117, %p118
      %p121 = scmp.ne.s32.totalorder %s106, %s120
      %p122 = scmp.eq.s32.totalorder %s19, 0
      %p123 = por %p121, %p122
      %s124 = ssub.s32 %s20, %s32
      %s125 = ssub.s32 %s21, %s28
      %s126 = sor.u32 %s124, %s125
      %p127 = scmp.eq.s32.totalorder %s126, 0
      %s129 = sadd.s32 %s128, 1
      %s130 = scalar_select %p127, %s128, %s129
      %p133 = pneg %p127
      %p134 = scmp.eq.s32.totalorder %s13, 1
      %p135 = por %p133, %p134
      %p136 = scmp.ne.s32.totalorder %s128, %s131
      %p137 = scmp.eq.s32.totalorder %s13, 0
      %p138 = por %p136, %p137
      %p139 = scmp.ne.s32.totalorder %s128, %s131
      %p140 = scmp.eq.s32.totalorder %s18, 1
      %p141 = por %p139, %p140
      %p142 = scmp.ne.s32.totalorder %s131, %s132
      %p143 = scmp.eq.s32.totalorder %s18, 0
      %p144 = por %p142, %p143
      %p145 = scmp.ne.s32.totalorder %s131, %s132
      %p146 = scmp.eq.s32.totalorder %s19, 1
      %p147 = por %p145, %p146
      %p149 = scmp.ne.s32.totalorder %s132, %s148
      %p150 = scmp.eq.s32.totalorder %s19, 0
      %p151 = por %p149, %p150
      %p152 = scmp.le.s32.totalorder 1, %s13
      %p153 = scmp.lt.s32.totalorder %s13, 3
      %p154 = pnand %p152, %p153
      %p155 = pneg %p154
      // Predicated region
      $region9: #{tpu_custom_call.1} parent=5 // pred_check
        _
      $region10: #{tpu_custom_call.1} parent=5 // pred_check_branch
        %157 = sbr.rel (%p154) target = $region12
      $region11: #{tpu_custom_call.1} parent=5 // pred_region
        %s158 = ssub.s32 %s13, 1
        // Predicated region
        $region13: #{tpu_custom_call.1} parent=11 // pred_check
          %p159 = pneg %p74
        $region14: #{tpu_custom_call.1} parent=11 // pred_check_branch
          %161 = sbr.rel (%p159) target = $region16
        $region15: #{tpu_custom_call.1} parent=11 // pred_region
          _
        $region16: #{tpu_custom_call.1} parent=11 // pred_fallthru
          _
        // Predicated region
        $region17: #{tpu_custom_call.1} parent=11 // pred_check
          %p162 = pneg %p95
        $region18: #{tpu_custom_call.1} parent=11 // pred_check_branch
          %164 = sbr.rel (%p162) target = $region20
        $region19: #{tpu_custom_call.1} parent=11 // pred_region
          _
        $region20: #{tpu_custom_call.1} parent=11 // pred_fallthru
          _
        // Predicated region
        $region21: #{tpu_custom_call.1} parent=11 // pred_check
          %p165 = pneg %p116
        $region22: #{tpu_custom_call.1} parent=11 // pred_check_branch
          %167 = sbr.rel (%p165) target = $region24
        $region23: #{tpu_custom_call.1} parent=11 // pred_region
          _
        $region24: #{tpu_custom_call.1} parent=11 // pred_fallthru
          _
      $region12: #{tpu_custom_call.1} parent=5 // pred_fallthru
        _
      %p168 = scmp.lt.s32.totalorder %s13, 2
      // Predicated region
      $region25: #{tpu_custom_call.1} parent=5 // pred_check
        %p169 = pneg %p168
      $region26: #{tpu_custom_call.1} parent=5 // pred_check_branch
        %171 = sbr.rel (%p169) target = $region28
      $region27: #{tpu_custom_call.1} parent=5 // pred_region
        // Predicated region
        $region29: #{tpu_custom_call.1} parent=27 // pred_check
          %p172 = pneg %p47
        $region30: #{tpu_custom_call.1} parent=27 // pred_check_branch
          %174 = sbr.rel (%p172) target = $region32
        $region31: #{tpu_custom_call.1} parent=27 // pred_region
          %p175 = scmp.lt.s32.totalorder %s20, 1
          %s176 = scalar_select %p175, %s20, 1
          %p177 = scmp.lt.s32.totalorder %s21, 0
          %s178 = scalar_select %p177, %s21, 0
          %s179 = sadd.s32 %s178, %s176
          %s180 = smul.addr %s179, 4
          %s181 = scalar_lea.vmem %s0, %s180
        $region32: #{tpu_custom_call.1} parent=27 // pred_fallthru
          _
      $region28: #{tpu_custom_call.1} parent=5 // pred_fallthru
        _
      %p182 = scmp.le.s32.totalorder 1, %s13
      %p183 = scmp.lt.s32.totalorder %s13, 3
      %p184 = pnand %p182, %p183
      %p185 = pneg %p184
      // Predicated region
      $region33: #{tpu_custom_call.1} parent=5 // pred_check
        _
      $region34: #{tpu_custom_call.1} parent=5 // pred_check_branch
        %187 = sbr.rel (%p184) target = $region36
      $region35: #{tpu_custom_call.1} parent=5 // pred_region
        %s188 = ssub.s32 %s13, 1
        %p189 = scmp.lt.s32.totalorder %s22, 1
        %s190 = scalar_select %p189, %s22, 1
        %p191 = scmp.lt.s32.totalorder %s23, 0
        %s192 = scalar_select %p191, %s23, 0
        %s193 = sadd.s32 %s192, %s190
        %s194 = smul.addr %s193, 4
        %s195 = scalar_lea.vmem %s0, %s194
        %p196 = pneg %p53
        %p197 = pneg %p50
        %p198 = pneg %p74
        %p199 = pneg %p71
        %p200 = pneg %p95
        %p201 = pneg %p92
        %p202 = pneg %p116
        %p203 = pneg %p113
        %p204 = pneg %p144
        %p205 = pneg %p141
        %s206 = sand.u32 %s131, 1
        %s207 = scalar_lea.sflag [#allocation3], %s206
        %s208 = sand.u32 %s131, 1
        %s209 = smul.addr %s208, 8
        %s210 = scalar_lea.vmem [#allocation2], %s209
        %p211 = scmp.lt.s32.totalorder %s22, 1
        %s212 = scalar_select %p211, %s22, 1
        %p213 = scmp.lt.s32.totalorder %s23, 0
        %s214 = scalar_select %p213, %s23, 0
        %s215 = sadd.s32 %s214, %s212
        %s216 = smul.addr %s215, 4
        %s217 = scalar_lea.vmem %s0, %s216
        %v218 = vld [vmem:[%s1] sm:$0xff]
        %v219 = vld [vmem:[%s217] sm:$0xf]
        %vm220 = vcmask 31744
        %v222 = vsel %vm220, %v218, 0
        %vm224 = vcmask 1043456
        %v226 = vsel %vm224, %v219, 0
        %228 = vmatpush.msra.mxu0 0.0
        %229 = vmatpush.msra.mxu0 0.0
        %230 = vmatpush.msra.mxu0 0.0
        %231 = vmatpush.msra.mxu0 0.0
        %232 = vmatpush.msra.mxu0 0.0
        %233 = vmatpush.msra.mxu0 0.0
        %234 = vmatpush.msra.mxu0 0.0
        %235 = vmatpush.msra.mxu0 0.0
        %236 = vmatpush.msra.mxu0 0.0
        %237 = vmatpush.msra.mxu0 0.0
        %238 = vmatpush.msra.mxu0 0.0
        %239 = vmatpush.msra.mxu0 0.0
        %240 = vmatpush.msra.mxu0 0.0
        %241 = vmatpush.msra.mxu0 0.0
        %242 = vmatpush.msra.mxu0 0.0
        %243 = vmatpush.msra.mxu0 %v226
        %244 = vmatmul.f32.gmra.mxu0 %v222
        %v245 = vpop.f32.mrf.mxu0
        %v246 = vadd.f32 0.0, %v245
        %247 = vdwg.mxu0
        %v248 = vld [vmem:[%s2] sm:$0xff]
        %250 = vset.pattern.permute.xlu0 0
        %251 = vperm.xlu0 %250, %v248
        %v252 = vpop.permute.xlu0 %251
        %v254 = vmul.f32 %v246, %v252
        %v255 = vld [vmem:[%s3] sm:$0xff]
        %257 = vset.pattern.permute.xlu0 0
        %258 = vperm.xlu0 %257, %v255
        %v259 = vpop.permute.xlu0 %258
        %v261 = vadd.f32 %v254, %v259
        %v262 = vmax.f32 %v261, 0.0
        %vm263 = vcmask 523264
        %264 = vst.msk [vmem:[%s210] sm:$0xff] %vm263, %v262
        %s265 = sand.u32 %s131, 1
        %s266 = scalar_lea.sflag [#allocation3], %s265
        %s267 = sand.u32 %s131, 1
        %s268 = smul.addr %s267, 8
        %s269 = scalar_lea.vmem [#allocation2], %s268
        // Predicated region
        $region37: #{tpu_custom_call.1} parent=35 // pred_check
          %p270 = pneg %p141
        $region38: #{tpu_custom_call.1} parent=35 // pred_check_branch
          %272 = sbr.rel (%p270) target = $region40
        $region39: #{tpu_custom_call.1} parent=35 // pred_region
          %274 = vsyncadd %s266, 0
          %s275 = sadd.s32 %s23, %s22
          %s276 = smul.addr %s275, 8
          %s277 = scalar_lea.hbm %s4, %s276
          %s279 = sshll.u32 %s269, 4
          %s280 = int_to_ptr.vmem [resolvable:$true] %s279
          %s281 = sshll.u32 %s277, 4
          %s282 = int_to_ptr.hbm [resolvable:$true] %s281
          %284 = dma.vmem_to_hbm [thread:$0]  %s280, 128, %s282, %s266
        $region40: #{tpu_custom_call.1} parent=35 // pred_fallthru
          _
      $region36: #{tpu_custom_call.1} parent=5 // pred_fallthru
        _
      %p285 = scmp.le.s32.totalorder 2, %s13
      // Predicated region
      $region41: #{tpu_custom_call.1} parent=5 // pred_check
        %p286 = pneg %p285
      $region42: #{tpu_custom_call.1} parent=5 // pred_check_branch
        %288 = sbr.rel (%p286) target = $region44
      $region43: #{tpu_custom_call.1} parent=5 // pred_region
        %s289 = ssub.s32 %s13, 2
        // Predicated region
        $region45: #{tpu_custom_call.1} parent=43 // pred_check
          %p290 = pneg %p147
        $region46: #{tpu_custom_call.1} parent=43 // pred_check_branch
          %292 = sbr.rel (%p290) target = $region48
        $region47: #{tpu_custom_call.1} parent=43 // pred_region
          %s293 = sand.u32 %s132, 1
          %s294 = scalar_lea.sflag [#allocation3], %s293
          %s295 = sand.u32 %s132, 1
          %s296 = smul.addr %s295, 8
          %s297 = scalar_lea.vmem [#allocation2], %s296
          %299 = dma.done %s294, 128
        $region48: #{tpu_custom_call.1} parent=43 // pred_fallthru
          _
      $region44: #{tpu_custom_call.1} parent=5 // pred_fallthru
        _
    $region6: #{tpu_custom_call.1} parent=1 // loop_footer
      %s17 = sadd.s32 1, %s13
    $region7: #{tpu_custom_call.1} parent=1 // loop_footer_branch
      %12 = sbr.rel target = $region3
    $region8: #{tpu_custom_call.1} parent=1 // loop_exit
      _
    %300 = vsyncpa [#allocation3], 1
    %s301 = scalar_lea.sflag [#allocation3], 1
    %302 = vsyncpa %s301, 1

</llo_original>
